<compile_context>
chip_gen: v6e
topology: v6e:2x2x1
jax: 0.10.0
libtpu: 0.0.40
codegen_flags: <defaults>
</compile_context>

<pallas_src>
import math

import jax
import jax.numpy as jnp
from jax.experimental import pallas as pl
from jax.experimental.pallas import tpu as pltpu


# Rows of the packed (9, D) per-feature parameter table.
_LN1_W, _LN1_B, _LN2_W, _LN2_B, _BO, _B2, _BQ, _BK, _BV = range(9)


# ----------------------------- kernel helpers -----------------------------

def _layernorm(x, w, b, eps=1e-6):
    # x: (R, D), w/b: (1, D)
    mean = jnp.mean(x, axis=-1, keepdims=True)
    var = jnp.mean(jnp.square(x - mean), axis=-1, keepdims=True)
    return (x - mean) * jax.lax.rsqrt(var + eps) * w + b


def _gelu_exact(x):
    # torch.nn.functional.gelu default (erf form)
    return 0.5 * x * (1.0 + jax.lax.erf(x * (1.0 / math.sqrt(2.0))))


def _attention(q, k, v, mm_dtype, kv_chunk):
    """Single-head self-attention over a (bt, S, D) batch tile; returns (bt, S, D) f32."""
    bt, s, d = q.shape
    # PyTorch scales q before the score matmul; fold it in before the bf16 cast.
    qm = (q * (1.0 / math.sqrt(d))).astype(mm_dtype)
    km = k.astype(mm_dtype)
    vm = v.astype(mm_dtype)

    if kv_chunk >= s or s % kv_chunk != 0:
        # Small S: the full (bt, S, S) score tensor fits comfortably in VMEM.
        sc = jnp.einsum("bqd,bkd->bqk", qm, km, preferred_element_type=jnp.float32)
        sc = sc - jnp.max(sc, axis=-1, keepdims=True)
        e = jnp.exp(sc)
        attn = (e * pl.reciprocal(jnp.sum(e, axis=-1, keepdims=True), approx=True)
                ).astype(mm_dtype)
        return jnp.einsum("bqk,bkd->bqd", attn, vm, preferred_element_type=jnp.float32)

    # Flash-style online softmax over KV chunks: never materialize (bt, S, S) f32.
    nchunks = s // kv_chunk
    m = jnp.full((bt, s, 1), -jnp.inf, dtype=jnp.float32)
    l = jnp.zeros((bt, s, 1), dtype=jnp.float32)
    acc = jnp.zeros((bt, s, d), dtype=jnp.float32)
    for c in range(nchunks):                       # static unroll; chunk count is small
        kc = km[:, c * kv_chunk:(c + 1) * kv_chunk, :]
        vc = vm[:, c * kv_chunk:(c + 1) * kv_chunk, :]
        sc = jnp.einsum("bqd,bkd->bqk", qm, kc, preferred_element_type=jnp.float32)
        m_new = jnp.maximum(m, jnp.max(sc, axis=-1, keepdims=True))
        alpha = jnp.exp(m - m_new)
        p = jnp.exp(sc - m_new)
        l = alpha * l + jnp.sum(p, axis=-1, keepdims=True)
        acc = alpha * acc + jnp.einsum("bqk,bkd->bqd", p.astype(mm_dtype), vc,
                                       preferred_element_type=jnp.float32)
        m = m_new
    return acc * pl.reciprocal(l, approx=True)


# ------------------------------- the kernel -------------------------------

def _make_kernel(fused_qkv, kv_chunk):
    def kernel(*refs):
        if fused_qkv:
            (x_ref, vecs_ref, wqkv_ref, wo_ref, w1_ref, b1_ref, w2_ref, out_ref) = refs
        else:
            (x_ref, vecs_ref, wq_ref, wk_ref, wv_ref,
             wo_ref, w1_ref, b1_ref, w2_ref, out_ref) = refs

        s, bt, d = x_ref.shape
        mm = wo_ref.dtype
        vecs = vecs_ref[...]

        # (S, bt, D) -> (bt, S, D): one in-VMEM layout change per block.  This
        # replaces the two whole-tensor HBM transposes the wrapper used to do
        # and keeps every einsum with a leading batch dim (clean MXU lowering).
        x = jnp.transpose(x_ref[...].astype(jnp.float32), (1, 0, 2)).reshape(bt * s, d)

        # ---- LayerNorm 1 ----
        x1 = _layernorm(x, vecs[_LN1_W:_LN1_W + 1, :],
                        vecs[_LN1_B:_LN1_B + 1, :]).astype(mm)

        # ---- QKV projection ----
        if fused_qkv:
            # D % 128 == 0: the (., 3D) output slices fall on 128-lane boundaries.
            qkv = jnp.dot(x1, wqkv_ref[...], preferred_element_type=jnp.float32)
            q = (qkv[:, 0 * d:1 * d] + vecs[_BQ:_BQ + 1, :]).reshape(bt, s, d)
            k = (qkv[:, 1 * d:2 * d] + vecs[_BK:_BK + 1, :]).reshape(bt, s, d)
            v = (qkv[:, 2 * d:3 * d] + vecs[_BV:_BV + 1, :]).reshape(bt, s, d)
        else:
            # Unaligned D: three lane-aligned matmuls instead of slicing a fused
            # (., 3D) result on non-128-aligned lane offsets.
            q = (jnp.dot(x1, wq_ref[...], preferred_element_type=jnp.float32)
                 + vecs[_BQ:_BQ + 1, :]).reshape(bt, s, d)
            k = (jnp.dot(x1, wk_ref[...], preferred_element_type=jnp.float32)
                 + vecs[_BK:_BK + 1, :]).reshape(bt, s, d)
            v = (jnp.dot(x1, wv_ref[...], preferred_element_type=jnp.float32)
                 + vecs[_BV:_BV + 1, :]).reshape(bt, s, d)

        # ---- attention + output projection + residual 1 ----
        ctx = _attention(q, k, v, mm, kv_chunk).reshape(bt * s, d)
        x2 = (jnp.dot(ctx.astype(mm), wo_ref[...], preferred_element_type=jnp.float32)
              + vecs[_BO:_BO + 1, :] + x)

        # ---- LayerNorm 2 + MLP (GELU, GELU) ----
        x3 = _layernorm(x2, vecs[_LN2_W:_LN2_W + 1, :], vecs[_LN2_B:_LN2_B + 1, :])
        h = _gelu_exact(jnp.dot(x3.astype(mm), w1_ref[...],
                                preferred_element_type=jnp.float32) + b1_ref[...])
        h = _gelu_exact(jnp.dot(h.astype(mm), w2_ref[...],
                                preferred_element_type=jnp.float32) + vecs[_B2:_B2 + 1, :])

        # ---- residual 2, back to the native (S, bt, D) layout ----
        y = (x2 + h).reshape(bt, s, d)
        out_ref[...] = jnp.transpose(y, (1, 0, 2)).astype(out_ref.dtype)

    return kernel


# --------------------------- tiling / VMEM sizing ---------------------------

def _vmem_budget_bytes():
    """Target budget for resident weights + blocks + live intermediates."""
    try:
        cap = getattr(pltpu.get_tpu_info(), "vmem_capacity_bytes", None)
        if cap:
            return int(min(cap * 0.5, 80 * 2 ** 20))
    except Exception:
        pass
    return 40 * 2 ** 20     # conservative: safe on v7x (64 MiB) and v5e/v6e (128 MiB)


def _pick_kv_chunk(seq, max_chunk=512):
    """KV chunk for flash-style attention; full-S (single chunk) when S is small."""
    if seq <= max_chunk:
        return seq
    for c in range(max_chunk, 127, -1):
        if seq % c == 0 and c % 8 == 0:
            return c
    return seq


def _vmem_estimate_bytes(bt, seq, d, kv_chunk):
    m = bt * seq
    weights = 8 * d * d * 2 + 11 * d * 4                 # bf16 weights + f32 vec table / b1
    io = 2 * (2 * m * d * 4)                             # double-buffered x / out blocks
    live = 4 * m * (10 * d)                              # f32 temporaries (compiler reuses)
    live += 2 * m * (4 * d)                              # bf16 staging copies
    live += 4 * m * d                                    # in-VMEM layout-change copies
    live += 3 * 4 * bt * seq * min(seq, kv_chunk)        # score / exp / weight chunk (f32)
    return weights + io + live


def _pick_batch_tile(batch, seq, d, kv_chunk, budget_bytes):
    # batch is the second-to-last dim of the (S, bt, D) block, so bt must be a
    # multiple of 8 (sublane tiling) or equal to the full batch dim.
    cands = [bt for bt in range(1, batch + 1)
             if batch % bt == 0 and (bt % 8 == 0 or bt == batch)]
    fits = [bt for bt in cands
            if _vmem_estimate_bytes(bt, seq, d, kv_chunk) <= budget_bytes]
    bt = max(fits) if fits else min(cands)
    # Prefer >= 2 grid steps when a valid, fitting tile allows it (v7x dual TC).
    if batch // bt < 2:
        multi = [c for c in (fits or cands) if batch // c >= 2]
        if multi:
            bt = max(multi)
    return bt


# --------------------------- parameter packing -----------------------------

def pack_params(p, matmul_dtype=jnp.bfloat16):
    """Consolidate the 16 logical parameters into a few kernel arrays."""
    D = p["wq"].shape[0]
    vecs = jnp.stack([p["ln1_w"], p["ln1_b"], p["ln2_w"], p["ln2_b"],
                      p["bo"], p["b2"], p["bq"], p["bk"], p["bv"]],
                     axis=0).astype(jnp.float32)                      # (9, D)
    kp = {
        "vecs": vecs,
        "wo": p["wo"].astype(matmul_dtype),
        "w1": p["w1"].astype(matmul_dtype),
        "b1": p["b1"][None, :].astype(jnp.float32),
        "w2": p["w2"].astype(matmul_dtype),
    }
    if D % 128 == 0:
        kp["wqkv"] = jnp.concatenate([p["wq"], p["wk"], p["wv"]],
                                     axis=1).astype(matmul_dtype)     # (D, 3D)
    else:
        kp["wq"] = p["wq"].astype(matmul_dtype)
        kp["wk"] = p["wk"].astype(matmul_dtype)
        kp["wv"] = p["wv"].astype(matmul_dtype)
    return kp


# ------------------------------- wrapper -----------------------------------

def transformer_layer(x_sbd, params, *, num_heads=1, matmul_dtype=jnp.bfloat16):
    """x_sbd: (seq, batch, projection_dim) float32 — PyTorch batch_first=False layout."""
    assert num_heads == 1, (
        "PyTorch module only runs when projection_dim // num_heads == projection_dim")
    S, B, D = x_sbd.shape

    kp = pack_params(params, matmul_dtype)
    fused = "wqkv" in kp
    kv_chunk = _pick_kv_chunk(S)
    budget = _vmem_budget_bytes()
    bt = _pick_batch_tile(B, S, D, kv_chunk, budget)
    grid = (B // bt,)

    if fused:
        plist = [kp["vecs"], kp["wqkv"], kp["wo"], kp["w1"], kp["b1"], kp["w2"]]
    else:
        plist = [kp["vecs"], kp["wq"], kp["wk"], kp["wv"],
                 kp["wo"], kp["w1"], kp["b1"], kp["w2"]]

    # Parameters: whole-array, single-buffered VMEM residents (their block never
    # changes across the grid — pipelined double-buffering would waste VMEM).
    def resident():
        return pl.BlockSpec(memory_space=pltpu.MemorySpace.VMEM)

    in_specs = ([pl.BlockSpec((S, bt, D), lambda i: (0, i, 0))]
                + [resident() for _ in plist])

    est = _vmem_estimate_bytes(bt, S, D, kv_chunk)
    vmem_limit = int(min(max(2 * est, 32 * 2 ** 20), 56 * 2 ** 20))

    out = pl.pallas_call(
        _make_kernel(fused, kv_chunk),
        out_shape=jax.ShapeDtypeStruct((S, B, D), x_sbd.dtype),
        grid=grid,
        in_specs=in_specs,
        out_specs=pl.BlockSpec((S, bt, D), lambda i: (0, i, 0)),
        compiler_params=pltpu.CompilerParams(
            dimension_semantics=("parallel",),
            vmem_limit_bytes=vmem_limit),
    )(x_sbd, *plist)
    return out                                                    # native (S, B, D)


# --------------------------- parameter creation -----------------------------

def init_params(key, projection_dim, num_heads):
    D = projection_dim
    E = projection_dim // num_heads          # nn.MultiheadAttention embed_dim
    assert E == D, "PyTorch module only runs when projection_dim // num_heads == projection_dim"

    ks = jax.random.split(key, 16)
    n = lambda k, shape, s=0.05: (s * jax.random.normal(k, shape, dtype=jnp.float32))
    return {
        "ln1_w": 1.0 + n(ks[0], (D,)),
        "ln1_b": n(ks[1], (D,)),
        "wq": n(ks[2], (E, E)), "wk": n(ks[3], (E, E)), "wv": n(ks[4], (E, E)),
        "bq": n(ks[5], (E,)), "bk": n(ks[6], (E,)), "bv": n(ks[7], (E,)),
        "wo": n(ks[8], (E, E)), "bo": n(ks[9], (E,)),
        "ln2_w": 1.0 + n(ks[10], (D,)),
        "ln2_b": n(ks[11], (D,)),
        "w1": n(ks[12], (D, 2 * D)), "b1": n(ks[13], (2 * D,)),
        "w2": n(ks[14], (2 * D, D)), "b2": n(ks[15], (D,)),
    }


# ------------------------------ pure-JAX reference --------------------------

def reference(x_sbd, p):
    def ln(x, w, b, eps=1e-6):
        m = jnp.mean(x, -1, keepdims=True)
        v = jnp.mean(jnp.square(x - m), -1, keepdims=True)
        return (x - m) / jnp.sqrt(v + eps) * w + b

    def gelu(x):
        return 0.5 * x * (1.0 + jax.lax.erf(x / jnp.sqrt(2.0)))

    x1 = ln(x_sbd, p["ln1_w"], p["ln1_b"])
    q = x1 @ p["wq"] + p["bq"]
    k = x1 @ p["wk"] + p["bk"]
    v = x1 @ p["wv"] + p["bv"]
    D = q.shape[-1]
    scale = 1.0 / math.sqrt(D)
    s = jnp.einsum("sbe,tbe->bst", q, k) * scale
    a = jax.nn.softmax(s, axis=-1)
    ctx = jnp.einsum("bst,tbe->sbe", a, v)
    attn_out = ctx @ p["wo"] + p["bo"]
    x2 = attn_out + x_sbd
    x3 = ln(x2, p["ln2_w"], p["ln2_b"])
    x3 = gelu(x3 @ p["w1"] + p["b1"])
    x3 = gelu(x3 @ p["w2"] + p["b2"])
    return x2 + x3


# ----------------------------------- main ------------------------------------

if __name__ == "__main__":
    SEQ, BATCH, PROJ_DIM, NUM_HEADS = 8, 2, 32, 1

    key = jax.random.PRNGKey(0)
    kx, kp = jax.random.split(key)
    x = jax.random.normal(kx, (SEQ, BATCH, PROJ_DIM), dtype=jnp.float32)
    params = init_params(kp, PROJ_DIM, NUM_HEADS)

    out = transformer_layer(x, params, num_heads=NUM_HEADS)
    out = jax.block_until_ready(out)

    ref = reference(x, params)
    assert out.shape == (SEQ, BATCH, PROJ_DIM)
    # Tolerance accounts for bf16 MXU matmul inputs (f32 accumulation) and the
    # approximate EUP reciprocal in the softmax normalization (intentional).
    if not jnp.allclose(out, ref, rtol=1e-2, atol=1e-2):
        err = float(jnp.max(jnp.abs(out - ref)))
        raise AssertionError(f"Pallas kernel output does not match reference (max abs err {err})")

    print("KERNEL_OK")
</pallas_src>

<mosaic_0001>
module attributes {stable_mosaic.version = 11 : i64} {
  func.func @kernel(%arg0: i32, %arg1: memref<8x2x32xf32, #tpu.memory_space<vmem>>, %arg2: memref<9x32xf32, #tpu.memory_space<vmem>>, %arg3: memref<32x32xbf16, #tpu.memory_space<vmem>>, %arg4: memref<32x32xbf16, #tpu.memory_space<vmem>>, %arg5: memref<32x32xbf16, #tpu.memory_space<vmem>>, %arg6: memref<32x32xbf16, #tpu.memory_space<vmem>>, %arg7: memref<32x64xbf16, #tpu.memory_space<vmem>>, %arg8: memref<1x64xf32, #tpu.memory_space<vmem>>, %arg9: memref<64x32xbf16, #tpu.memory_space<vmem>>, %arg10: memref<8x2x32xf32, #tpu.memory_space<vmem>>) attributes {dimension_semantics = [#tpu.dimension_semantics<parallel>], iteration_bounds = array<i64: 1>, scalar_prefetch = 0 : i64, scratch_operands = 0 : i64, tpu.core_type = #tpu.core_type<tc>, window_params = [{transform_indices = @transform_0, window_bounds = array<i64: 8, 2, 32>}, {pipeline_mode = #tpu.pipeline_mode<synchronous>, transform_indices = @transform_1, window_bounds = array<i64: 9, 32>}, {pipeline_mode = #tpu.pipeline_mode<synchronous>, transform_indices = @transform_2, window_bounds = array<i64: 32, 32>}, {pipeline_mode = #tpu.pipeline_mode<synchronous>, transform_indices = @transform_3, window_bounds = array<i64: 32, 32>}, {pipeline_mode = #tpu.pipeline_mode<synchronous>, transform_indices = @transform_4, window_bounds = array<i64: 32, 32>}, {pipeline_mode = #tpu.pipeline_mode<synchronous>, transform_indices = @transform_5, window_bounds = array<i64: 32, 32>}, {pipeline_mode = #tpu.pipeline_mode<synchronous>, transform_indices = @transform_6, window_bounds = array<i64: 32, 64>}, {pipeline_mode = #tpu.pipeline_mode<synchronous>, transform_indices = @transform_7, window_bounds = array<i64: 1, 64>}, {pipeline_mode = #tpu.pipeline_mode<synchronous>, transform_indices = @transform_8, window_bounds = array<i64: 64, 32>}, {transform_indices = @transform_9, window_bounds = array<i64: 8, 2, 32>}]} {
    %c0 = arith.constant 0 : index
    %c0_0 = arith.constant 0 : index
    %0 = vector.load %arg2[%c0, %c0_0] : memref<9x32xf32, #tpu.memory_space<vmem>>, vector<9x32xf32>
    %c0_1 = arith.constant 0 : index
    %c0_2 = arith.constant 0 : index
    %c0_3 = arith.constant 0 : index
    %1 = vector.load %arg1[%c0_1, %c0_2, %c0_3] : memref<8x2x32xf32, #tpu.memory_space<vmem>>, vector<8x2x32xf32>
    %2 = tpu.transpose %1, [1, 0, 2] : vector<8x2x32xf32> -> vector<2x8x32xf32>
    %3 = vector.shape_cast %2 : vector<2x8x32xf32> to vector<16x32xf32>
    %4 = vector.extract_strided_slice %0 {offsets = [0, 0], sizes = [1, 32], strides = [1, 1]} : vector<9x32xf32> to vector<1x32xf32>
    %5 = vector.extract_strided_slice %0 {offsets = [1, 0], sizes = [1, 32], strides = [1, 1]} : vector<9x32xf32> to vector<1x32xf32>
    %cst = arith.constant dense<0.000000e+00> : vector<16xf32>
    %6 = vector.multi_reduction <add>, %3, %cst [1] : vector<16x32xf32> to vector<16xf32>
    %7 = vector.shape_cast %6 : vector<16xf32> to vector<16x1xf32>
    %cst_4 = arith.constant 3.200000e+01 : f32
    %8 = vector.broadcast %cst_4 : f32 to vector<16x1xf32>
    %9 = arith.divf %7, %8 : vector<16x1xf32>
    %10 = vector.broadcast %9 : vector<16x1xf32> to vector<16x32xf32>
    %11 = arith.subf %3, %10 : vector<16x32xf32>
    %12 = arith.mulf %11, %11 : vector<16x32xf32>
    %cst_5 = arith.constant dense<0.000000e+00> : vector<16xf32>
    %13 = vector.multi_reduction <add>, %12, %cst_5 [1] : vector<16x32xf32> to vector<16xf32>
    %14 = vector.shape_cast %13 : vector<16xf32> to vector<16x1xf32>
    %cst_6 = arith.constant 3.200000e+01 : f32
    %15 = vector.broadcast %cst_6 : f32 to vector<16x1xf32>
    %16 = arith.divf %14, %15 : vector<16x1xf32>
    %17 = vector.broadcast %9 : vector<16x1xf32> to vector<16x32xf32>
    %18 = arith.subf %3, %17 : vector<16x32xf32>
    %cst_7 = arith.constant 9.99999997E-7 : f32
    %19 = vector.broadcast %cst_7 : f32 to vector<16x1xf32>
    %20 = arith.addf %16, %19 : vector<16x1xf32>
    %21 = math.rsqrt %20 : vector<16x1xf32>
    %22 = vector.broadcast %21 : vector<16x1xf32> to vector<16x32xf32>
    %23 = arith.mulf %18, %22 : vector<16x32xf32>
    %24 = vector.broadcast %4 : vector<1x32xf32> to vector<16x32xf32>
    %25 = arith.mulf %23, %24 : vector<16x32xf32>
    %26 = vector.broadcast %5 : vector<1x32xf32> to vector<16x32xf32>
    %27 = arith.addf %25, %26 : vector<16x32xf32>
    %28 = arith.truncf %27 : vector<16x32xf32> to vector<16x32xbf16>
    %c0_8 = arith.constant 0 : index
    %c0_9 = arith.constant 0 : index
    %29 = vector.load %arg3[%c0_8, %c0_9] : memref<32x32xbf16, #tpu.memory_space<vmem>>, vector<32x32xbf16>
    %cst_10 = arith.constant dense<0.000000e+00> : vector<16x32xf32>
    %30 = tpu.matmul %28, %29, %cst_10 {dimension_numbers = #tpu.dot_dimension_numbers<[1], [0], [0], [1], [0, 0, 1, 1], [], []>} : vector<16x32xbf16>, vector<32x32xbf16>, vector<16x32xf32> -> vector<16x32xf32>
    %31 = vector.extract_strided_slice %0 {offsets = [6, 0], sizes = [1, 32], strides = [1, 1]} : vector<9x32xf32> to vector<1x32xf32>
    %32 = vector.broadcast %31 : vector<1x32xf32> to vector<16x32xf32>
    %33 = arith.addf %30, %32 : vector<16x32xf32>
    %34 = vector.shape_cast %33 : vector<16x32xf32> to vector<2x8x32xf32>
    %c0_11 = arith.constant 0 : index
    %c0_12 = arith.constant 0 : index
    %35 = vector.load %arg4[%c0_11, %c0_12] : memref<32x32xbf16, #tpu.memory_space<vmem>>, vector<32x32xbf16>
    %cst_13 = arith.constant dense<0.000000e+00> : vector<16x32xf32>
    %36 = tpu.matmul %28, %35, %cst_13 {dimension_numbers = #tpu.dot_dimension_numbers<[1], [0], [0], [1], [0, 0, 1, 1], [], []>} : vector<16x32xbf16>, vector<32x32xbf16>, vector<16x32xf32> -> vector<16x32xf32>
    %37 = vector.extract_strided_slice %0 {offsets = [7, 0], sizes = [1, 32], strides = [1, 1]} : vector<9x32xf32> to vector<1x32xf32>
    %38 = vector.broadcast %37 : vector<1x32xf32> to vector<16x32xf32>
    %39 = arith.addf %36, %38 : vector<16x32xf32>
    %40 = vector.shape_cast %39 : vector<16x32xf32> to vector<2x8x32xf32>
    %c0_14 = arith.constant 0 : index
    %c0_15 = arith.constant 0 : index
    %41 = vector.load %arg5[%c0_14, %c0_15] : memref<32x32xbf16, #tpu.memory_space<vmem>>, vector<32x32xbf16>
    %cst_16 = arith.constant dense<0.000000e+00> : vector<16x32xf32>
    %42 = tpu.matmul %28, %41, %cst_16 {dimension_numbers = #tpu.dot_dimension_numbers<[1], [0], [0], [1], [0, 0, 1, 1], [], []>} : vector<16x32xbf16>, vector<32x32xbf16>, vector<16x32xf32> -> vector<16x32xf32>
    %43 = vector.extract_strided_slice %0 {offsets = [8, 0], sizes = [1, 32], strides = [1, 1]} : vector<9x32xf32> to vector<1x32xf32>
    %44 = vector.broadcast %43 : vector<1x32xf32> to vector<16x32xf32>
    %45 = arith.addf %42, %44 : vector<16x32xf32>
    %46 = vector.shape_cast %45 : vector<16x32xf32> to vector<2x8x32xf32>
    %cst_17 = arith.constant 0.176776692 : f32
    %47 = vector.broadcast %cst_17 : f32 to vector<2x8x32xf32>
    %48 = arith.mulf %34, %47 : vector<2x8x32xf32>
    %49 = arith.truncf %48 : vector<2x8x32xf32> to vector<2x8x32xbf16>
    %50 = arith.truncf %40 : vector<2x8x32xf32> to vector<2x8x32xbf16>
    %51 = arith.truncf %46 : vector<2x8x32xf32> to vector<2x8x32xbf16>
    "tpu.trace_start"() <{level = 10 : i32, message = "bqd,bkd->bqk"}> : () -> ()
    %cst_18 = arith.constant dense<0.000000e+00> : vector<2x8x8xf32>
    %52 = tpu.matmul %49, %50, %cst_18 {dimension_numbers = #tpu.dot_dimension_numbers<[2], [2], [1], [1], [0, 0, 0, 1, 1, 1], [0], [0]>} : vector<2x8x32xbf16>, vector<2x8x32xbf16>, vector<2x8x8xf32> -> vector<2x8x8xf32>
    "tpu.trace_stop"() : () -> ()
    %cst_19 = arith.constant dense<0xFF800000> : vector<2x8xf32>
    %53 = vector.multi_reduction <maximumf>, %52, %cst_19 [2] : vector<2x8x8xf32> to vector<2x8xf32>
    %54 = vector.shape_cast %53 : vector<2x8xf32> to vector<2x8x1xf32>
    %55 = vector.broadcast %54 : vector<2x8x1xf32> to vector<2x8x8xf32>
    %56 = arith.subf %52, %55 : vector<2x8x8xf32>
    %57 = math.exp %56 : vector<2x8x8xf32>
    %cst_20 = arith.constant dense<0.000000e+00> : vector<2x8xf32>
    %58 = vector.multi_reduction <add>, %57, %cst_20 [2] : vector<2x8x8xf32> to vector<2x8xf32>
    %59 = vector.shape_cast %58 : vector<2x8xf32> to vector<2x8x1xf32>
    %60 = tpu.reciprocal %59 {approx = true} : vector<2x8x1xf32> -> vector<2x8x1xf32>
    %61 = vector.broadcast %60 : vector<2x8x1xf32> to vector<2x8x8xf32>
    %62 = arith.mulf %57, %61 : vector<2x8x8xf32>
    %63 = arith.truncf %62 : vector<2x8x8xf32> to vector<2x8x8xbf16>
    "tpu.trace_start"() <{level = 10 : i32, message = "bqk,bkd->bqd"}> : () -> ()
    %cst_21 = arith.constant dense<0.000000e+00> : vector<2x8x32xf32>
    %64 = tpu.matmul %63, %51, %cst_21 {dimension_numbers = #tpu.dot_dimension_numbers<[2], [1], [1], [2], [0, 0, 0, 1, 1, 2], [0], [0]>} : vector<2x8x8xbf16>, vector<2x8x32xbf16>, vector<2x8x32xf32> -> vector<2x8x32xf32>
    "tpu.trace_stop"() : () -> ()
    %65 = vector.shape_cast %64 : vector<2x8x32xf32> to vector<16x32xf32>
    %66 = arith.truncf %65 : vector<16x32xf32> to vector<16x32xbf16>
    %c0_22 = arith.constant 0 : index
    %c0_23 = arith.constant 0 : index
    %67 = vector.load %arg6[%c0_22, %c0_23] : memref<32x32xbf16, #tpu.memory_space<vmem>>, vector<32x32xbf16>
    %cst_24 = arith.constant dense<0.000000e+00> : vector<16x32xf32>
    %68 = tpu.matmul %66, %67, %cst_24 {dimension_numbers = #tpu.dot_dimension_numbers<[1], [0], [0], [1], [0, 0, 1, 1], [], []>} : vector<16x32xbf16>, vector<32x32xbf16>, vector<16x32xf32> -> vector<16x32xf32>
    %69 = vector.extract_strided_slice %0 {offsets = [4, 0], sizes = [1, 32], strides = [1, 1]} : vector<9x32xf32> to vector<1x32xf32>
    %70 = vector.broadcast %69 : vector<1x32xf32> to vector<16x32xf32>
    %71 = arith.addf %68, %70 : vector<16x32xf32>
    %72 = arith.addf %71, %3 : vector<16x32xf32>
    %73 = vector.extract_strided_slice %0 {offsets = [2, 0], sizes = [1, 32], strides = [1, 1]} : vector<9x32xf32> to vector<1x32xf32>
    %74 = vector.extract_strided_slice %0 {offsets = [3, 0], sizes = [1, 32], strides = [1, 1]} : vector<9x32xf32> to vector<1x32xf32>
    %cst_25 = arith.constant dense<0.000000e+00> : vector<16xf32>
    %75 = vector.multi_reduction <add>, %72, %cst_25 [1] : vector<16x32xf32> to vector<16xf32>
    %76 = vector.shape_cast %75 : vector<16xf32> to vector<16x1xf32>
    %cst_26 = arith.constant 3.200000e+01 : f32
    %77 = vector.broadcast %cst_26 : f32 to vector<16x1xf32>
    %78 = arith.divf %76, %77 : vector<16x1xf32>
    %79 = vector.broadcast %78 : vector<16x1xf32> to vector<16x32xf32>
    %80 = arith.subf %72, %79 : vector<16x32xf32>
    %81 = arith.mulf %80, %80 : vector<16x32xf32>
    %cst_27 = arith.constant dense<0.000000e+00> : vector<16xf32>
    %82 = vector.multi_reduction <add>, %81, %cst_27 [1] : vector<16x32xf32> to vector<16xf32>
    %83 = vector.shape_cast %82 : vector<16xf32> to vector<16x1xf32>
    %cst_28 = arith.constant 3.200000e+01 : f32
    %84 = vector.broadcast %cst_28 : f32 to vector<16x1xf32>
    %85 = arith.divf %83, %84 : vector<16x1xf32>
    %86 = vector.broadcast %78 : vector<16x1xf32> to vector<16x32xf32>
    %87 = arith.subf %72, %86 : vector<16x32xf32>
    %cst_29 = arith.constant 9.99999997E-7 : f32
    %88 = vector.broadcast %cst_29 : f32 to vector<16x1xf32>
    %89 = arith.addf %85, %88 : vector<16x1xf32>
    %90 = math.rsqrt %89 : vector<16x1xf32>
    %91 = vector.broadcast %90 : vector<16x1xf32> to vector<16x32xf32>
    %92 = arith.mulf %87, %91 : vector<16x32xf32>
    %93 = vector.broadcast %73 : vector<1x32xf32> to vector<16x32xf32>
    %94 = arith.mulf %92, %93 : vector<16x32xf32>
    %95 = vector.broadcast %74 : vector<1x32xf32> to vector<16x32xf32>
    %96 = arith.addf %94, %95 : vector<16x32xf32>
    %97 = arith.truncf %96 : vector<16x32xf32> to vector<16x32xbf16>
    %c0_30 = arith.constant 0 : index
    %c0_31 = arith.constant 0 : index
    %98 = vector.load %arg7[%c0_30, %c0_31] : memref<32x64xbf16, #tpu.memory_space<vmem>>, vector<32x64xbf16>
    %cst_32 = arith.constant dense<0.000000e+00> : vector<16x64xf32>
    %99 = tpu.matmul %97, %98, %cst_32 {dimension_numbers = #tpu.dot_dimension_numbers<[1], [0], [0], [1], [0, 0, 1, 1], [], []>} : vector<16x32xbf16>, vector<32x64xbf16>, vector<16x64xf32> -> vector<16x64xf32>
    %c0_33 = arith.constant 0 : index
    %c0_34 = arith.constant 0 : index
    %100 = vector.load %arg8[%c0_33, %c0_34] : memref<1x64xf32, #tpu.memory_space<vmem>>, vector<1x64xf32>
    %101 = vector.broadcast %100 : vector<1x64xf32> to vector<16x64xf32>
    %102 = arith.addf %99, %101 : vector<16x64xf32>
    %cst_35 = arith.constant 5.000000e-01 : f32
    %103 = vector.broadcast %cst_35 : f32 to vector<16x64xf32>
    %104 = arith.mulf %103, %102 : vector<16x64xf32>
    %cst_36 = arith.constant 0.707106769 : f32
    %105 = vector.broadcast %cst_36 : f32 to vector<16x64xf32>
    %106 = arith.mulf %102, %105 : vector<16x64xf32>
    %107 = math.erf %106 : vector<16x64xf32>
    %cst_37 = arith.constant 1.000000e+00 : f32
    %108 = vector.broadcast %cst_37 : f32 to vector<16x64xf32>
    %109 = arith.addf %108, %107 : vector<16x64xf32>
    %110 = arith.mulf %104, %109 : vector<16x64xf32>
    %111 = arith.truncf %110 : vector<16x64xf32> to vector<16x64xbf16>
    %c0_38 = arith.constant 0 : index
    %c0_39 = arith.constant 0 : index
    %112 = vector.load %arg9[%c0_38, %c0_39] : memref<64x32xbf16, #tpu.memory_space<vmem>>, vector<64x32xbf16>
    %cst_40 = arith.constant dense<0.000000e+00> : vector<16x32xf32>
    %113 = tpu.matmul %111, %112, %cst_40 {dimension_numbers = #tpu.dot_dimension_numbers<[1], [0], [0], [1], [0, 0, 1, 1], [], []>} : vector<16x64xbf16>, vector<64x32xbf16>, vector<16x32xf32> -> vector<16x32xf32>
    %114 = vector.extract_strided_slice %0 {offsets = [5, 0], sizes = [1, 32], strides = [1, 1]} : vector<9x32xf32> to vector<1x32xf32>
    %115 = vector.broadcast %114 : vector<1x32xf32> to vector<16x32xf32>
    %116 = arith.addf %113, %115 : vector<16x32xf32>
    %cst_41 = arith.constant 5.000000e-01 : f32
    %117 = vector.broadcast %cst_41 : f32 to vector<16x32xf32>
    %118 = arith.mulf %117, %116 : vector<16x32xf32>
    %cst_42 = arith.constant 0.707106769 : f32
    %119 = vector.broadcast %cst_42 : f32 to vector<16x32xf32>
    %120 = arith.mulf %116, %119 : vector<16x32xf32>
    %121 = math.erf %120 : vector<16x32xf32>
    %cst_43 = arith.constant 1.000000e+00 : f32
    %122 = vector.broadcast %cst_43 : f32 to vector<16x32xf32>
    %123 = arith.addf %122, %121 : vector<16x32xf32>
    %124 = arith.mulf %118, %123 : vector<16x32xf32>
    %125 = arith.addf %72, %124 : vector<16x32xf32>
    %126 = vector.shape_cast %125 : vector<16x32xf32> to vector<2x8x32xf32>
    %127 = tpu.transpose %126, [1, 0, 2] : vector<2x8x32xf32> -> vector<8x2x32xf32>
    %c0_44 = arith.constant 0 : index
    %c0_45 = arith.constant 0 : index
    %c0_46 = arith.constant 0 : index
    %128 = vector.load %arg10[%c0_44, %c0_45, %c0_46] : memref<8x2x32xf32, #tpu.memory_space<vmem>>, vector<8x2x32xf32>
    tpu.vector_store %arg10[%c0_44, %c0_45, %c0_46], %127 {strides = array<i32>} : memref<8x2x32xf32, #tpu.memory_space<vmem>>, vector<8x2x32xf32>,
    return
  }
  func.func @transform_0(%arg0: i32) -> (i32, i32, i32) {
    %c0_i32 = arith.constant 0 : i32
    %c0_i32_0 = arith.constant 0 : i32
    %c0_i32_1 = arith.constant 0 : i32
    return %c0_i32, %arg0, %c0_i32_0 : i32, i32, i32
  }
  func.func @transform_1(%arg0: i32) -> (i32, i32) {
    %c0_i32 = arith.constant 0 : i32
    %c0_i32_0 = arith.constant 0 : i32
    %c0_i32_1 = arith.constant 0 : i32
    return %c0_i32, %c0_i32_0 : i32, i32
  }
  func.func @transform_2(%arg0: i32) -> (i32, i32) {
    %c0_i32 = arith.constant 0 : i32
    %c0_i32_0 = arith.constant 0 : i32
    %c0_i32_1 = arith.constant 0 : i32
    return %c0_i32, %c0_i32_0 : i32, i32
  }
  func.func @transform_3(%arg0: i32) -> (i32, i32) {
    %c0_i32 = arith.constant 0 : i32
    %c0_i32_0 = arith.constant 0 : i32
    %c0_i32_1 = arith.constant 0 : i32
    return %c0_i32, %c0_i32_0 : i32, i32
  }
  func.func @transform_4(%arg0: i32) -> (i32, i32) {
    %c0_i32 = arith.constant 0 : i32
    %c0_i32_0 = arith.constant 0 : i32
    %c0_i32_1 = arith.constant 0 : i32
    return %c0_i32, %c0_i32_0 : i32, i32
  }
  func.func @transform_5(%arg0: i32) -> (i32, i32) {
    %c0_i32 = arith.constant 0 : i32
    %c0_i32_0 = arith.constant 0 : i32
    %c0_i32_1 = arith.constant 0 : i32
    return %c0_i32, %c0_i32_0 : i32, i32
  }
  func.func @transform_6(%arg0: i32) -> (i32, i32) {
    %c0_i32 = arith.constant 0 : i32
    %c0_i32_0 = arith.constant 0 : i32
    %c0_i32_1 = arith.constant 0 : i32
    return %c0_i32, %c0_i32_0 : i32, i32
  }
  func.func @transform_7(%arg0: i32) -> (i32, i32) {
    %c0_i32 = arith.constant 0 : i32
    %c0_i32_0 = arith.constant 0 : i32
    %c0_i32_1 = arith.constant 0 : i32
    return %c0_i32, %c0_i32_0 : i32, i32
  }
  func.func @transform_8(%arg0: i32) -> (i32, i32) {
    %c0_i32 = arith.constant 0 : i32
    %c0_i32_0 = arith.constant 0 : i32
    %c0_i32_1 = arith.constant 0 : i32
    return %c0_i32, %c0_i32_0 : i32, i32
  }
  func.func @transform_9(%arg0: i32) -> (i32, i32, i32) {
    %c0_i32 = arith.constant 0 : i32
    %c0_i32_0 = arith.constant 0 : i32
    %c0_i32_1 = arith.constant 0 : i32
    return %c0_i32, %arg0, %c0_i32_0 : i32, i32, i32
  }
}

</mosaic_0001>

<llo_original>
// kernel: tpu_custom_call.1
$region0: #{tpu_custom_call.1}
  #allocation0 [shape = 'u32[]', space=smem, size = 0x4, offset = 0x4, fixed_abs, tag = 'smem constant byte address 0x4 - core index']
  #allocation1 [shape = 'u32[144,128]{1,0:T(1,128)}', space=vmem, size = 0x12000, scoped, tag = 'internal scratch']
  %s0 = inlined_call_operand.vmem [shape: f32[8,2,32], index: 0, kind: input, shape index: {}]
  %s1 = inlined_call_operand.vmem [shape: f32[9,32], index: 1, kind: input, shape index: {}]
  %s2 = inlined_call_operand.vmem [shape: bf16[32,32], index: 2, kind: input, shape index: {}]
  %s3 = inlined_call_operand.hbm [shape: bf16[32,32], index: 3, kind: input, shape index: {}]
  %s4 = inlined_call_operand.hbm [shape: bf16[32,32], index: 4, kind: input, shape index: {}]
  %s5 = inlined_call_operand.hbm [shape: bf16[32,32], index: 5, kind: input, shape index: {}]
  %s6 = inlined_call_operand.hbm [shape: bf16[32,64], index: 6, kind: input, shape index: {}]
  %s7 = inlined_call_operand.vmem [shape: f32[1,64], index: 7, kind: input, shape index: {}]
  %s8 = inlined_call_operand.vmem [shape: bf16[64,32], index: 8, kind: input, shape index: {}]
  %s9 = inlined_call_operand.hbm [shape: f32[8,2,32], index: 9, kind: output, shape index: {}]
  %s10 = sld [smem:[#allocation0]]
  $region62: #{tpu_custom_call.1} parent=0
    _
  %s12 = ssub.s32 1, %s10
  %s13 = scalar_select 0, %s12, %s10
  $region1: #{tpu_custom_call.1} parent=0
    #allocation2 [shape = 'u8[8192]{0}', space=vmem, size = 0x2000, scoped, tag = 'input window, operand 3, single buffered']
    #allocation3 [shape = 's32[1]{0}', space=sflag, size = 0x4, scoped, tag = 'scoped memory for tpu_custom_call.1']
    #allocation4 [shape = 's32[1]{0}', space=sflag, size = 0x4, scoped, tag = 'scoped memory for tpu_custom_call.1']
    #allocation5 [shape = 'u8[8192]{0}', space=vmem, size = 0x2000, scoped, tag = 'input window, operand 4, single buffered']
    #allocation6 [shape = 's32[1]{0}', space=sflag, size = 0x4, scoped, tag = 'scoped memory for tpu_custom_call.1']
    #allocation7 [shape = 'u8[8192]{0}', space=vmem, size = 0x2000, scoped, tag = 'input window, operand 5, single buffered']
    #allocation8 [shape = 'u8[8192]{0}', space=vmem, size = 0x2000, scoped, tag = 'input window, operand 6, single buffered']
    #allocation9 [shape = 's32[1]{0}', space=sflag, size = 0x4, scoped, tag = 'scoped memory for tpu_custom_call.1']
    #allocation10 [shape = 'u8[8192]{0}', space=vmem, size = 0x2000, scoped, tag = 'output window, operand 0, single buffered']
    %14 = vsyncpa [#allocation3], 0
    %15 = vsyncpa [#allocation6], 0
    %16 = vsyncpa [#allocation9], 0
    %17 = vsyncpa [#allocation4], 0
    // Predicated region
    $region2: #{tpu_custom_call.1} parent=1 // pred_check
      _
    $region3: #{tpu_custom_call.1} parent=1 // pred_check_branch
      %19 = sbr.rel (0) target = $region5
    $region4: #{tpu_custom_call.1} parent=1 // pred_region
      _
    $region5: #{tpu_custom_call.1} parent=1 // pred_fallthru
      _
    // Predicated region
    $region6: #{tpu_custom_call.1} parent=1 // pred_check
      _
    $region7: #{tpu_custom_call.1} parent=1 // pred_check_branch
      %21 = sbr.rel (0) target = $region9
    $region8: #{tpu_custom_call.1} parent=1 // pred_region
      _
    $region9: #{tpu_custom_call.1} parent=1 // pred_fallthru
      _
    // Predicated region
    $region10: #{tpu_custom_call.1} parent=1 // pred_check
      _
    $region11: #{tpu_custom_call.1} parent=1 // pred_check_branch
      %23 = sbr.rel (0) target = $region13
    $region12: #{tpu_custom_call.1} parent=1 // pred_region
      _
    $region13: #{tpu_custom_call.1} parent=1 // pred_fallthru
      _
    // Predicated region
    $region14: #{tpu_custom_call.1} parent=1 // pred_check
      _
    $region15: #{tpu_custom_call.1} parent=1 // pred_check_branch
      %25 = sbr.rel (0) target = $region17
    $region16: #{tpu_custom_call.1} parent=1 // pred_region
      %s27 = ssub.s32 256, 256
      %28 = vsyncadd [#allocation3], %s27
      %s29 = sshll.u32 [#allocation2], 4
      %s30 = int_to_ptr.vmem [resolvable:$true] %s29
      %35 = dma.hbm_to_vmem [thread:$0]  %s3, 256, %s30, [#allocation3], 64, 64, 4
    $region17: #{tpu_custom_call.1} parent=1 // pred_fallthru
      _
    // Predicated region
    $region18: #{tpu_custom_call.1} parent=1 // pred_check
      _
    $region19: #{tpu_custom_call.1} parent=1 // pred_check_branch
      %37 = sbr.rel (0) target = $region21
    $region20: #{tpu_custom_call.1} parent=1 // pred_region
      %s39 = ssub.s32 256, 256
      %40 = vsyncadd [#allocation6], %s39
      %s41 = sshll.u32 [#allocation5], 4
      %s42 = int_to_ptr.vmem [resolvable:$true] %s41
      %47 = dma.hbm_to_vmem [thread:$0]  %s4, 256, %s42, [#allocation6], 64, 64, 4
    $region21: #{tpu_custom_call.1} parent=1 // pred_fallthru
      _
    // Predicated region
    $region22: #{tpu_custom_call.1} parent=1 // pred_check
      _
    $region23: #{tpu_custom_call.1} parent=1 // pred_check_branch
      %49 = sbr.rel (0) target = $region25
    $region24: #{tpu_custom_call.1} parent=1 // pred_region
      %s51 = ssub.s32 256, 256
      %52 = vsyncadd [#allocation6], %s51
      %s53 = sshll.u32 [#allocation7], 4
      %s54 = int_to_ptr.vmem [resolvable:$true] %s53
      %59 = dma.hbm_to_vmem [thread:$0]  %s5, 256, %s54, [#allocation6], 64, 64, 4
    $region25: #{tpu_custom_call.1} parent=1 // pred_fallthru
      _
    // Predicated region
    $region26: #{tpu_custom_call.1} parent=1 // pred_check
      _
    $region27: #{tpu_custom_call.1} parent=1 // pred_check_branch
      %61 = sbr.rel (0) target = $region29
    $region28: #{tpu_custom_call.1} parent=1 // pred_region
      %s63 = ssub.s32 256, 256
      %64 = vsyncadd [#allocation9], %s63
      %s65 = sshll.u32 [#allocation8], 4
      %s66 = int_to_ptr.vmem [resolvable:$true] %s65
      %71 = dma.hbm_to_vmem [thread:$0]  %s6, 256, %s66, [#allocation9], 64, 64, 4
    $region29: #{tpu_custom_call.1} parent=1 // pred_fallthru
      _
    // Predicated region
    $region30: #{tpu_custom_call.1} parent=1 // pred_check
      _
    $region31: #{tpu_custom_call.1} parent=1 // pred_check_branch
      %73 = sbr.rel (0) target = $region33
    $region32: #{tpu_custom_call.1} parent=1 // pred_region
      _
    $region33: #{tpu_custom_call.1} parent=1 // pred_fallthru
      _
    // Predicated region
    $region34: #{tpu_custom_call.1} parent=1 // pred_check
      _
    $region35: #{tpu_custom_call.1} parent=1 // pred_check_branch
      %75 = sbr.rel (0) target = $region37
    $region36: #{tpu_custom_call.1} parent=1 // pred_region
      _
    $region37: #{tpu_custom_call.1} parent=1 // pred_fallthru
      _
    // Predicated region
    $region38: #{tpu_custom_call.1} parent=1 // pred_check
      _
    $region39: #{tpu_custom_call.1} parent=1 // pred_check_branch
      %77 = sbr.rel (0) target = $region41
    $region40: #{tpu_custom_call.1} parent=1 // pred_region
      %78 = dma.done [#allocation3], 256
    $region41: #{tpu_custom_call.1} parent=1 // pred_fallthru
      _
    // Predicated region
    $region42: #{tpu_custom_call.1} parent=1 // pred_check
      _
    $region43: #{tpu_custom_call.1} parent=1 // pred_check_branch
      %80 = sbr.rel (0) target = $region45
    $region44: #{tpu_custom_call.1} parent=1 // pred_region
      %81 = dma.done [#allocation6], 256
    $region45: #{tpu_custom_call.1} parent=1 // pred_fallthru
      _
    // Predicated region
    $region46: #{tpu_custom_call.1} parent=1 // pred_check
      _
    $region47: #{tpu_custom_call.1} parent=1 // pred_check_branch
      %83 = sbr.rel (0) target = $region49
    $region48: #{tpu_custom_call.1} parent=1 // pred_region
      %84 = dma.done [#allocation6], 256
    $region49: #{tpu_custom_call.1} parent=1 // pred_fallthru
      _
    // Predicated region
    $region50: #{tpu_custom_call.1} parent=1 // pred_check
      _
    $region51: #{tpu_custom_call.1} parent=1 // pred_check_branch
      %86 = sbr.rel (0) target = $region53
    $region52: #{tpu_custom_call.1} parent=1 // pred_region
      %87 = dma.done [#allocation9], 256
    $region53: #{tpu_custom_call.1} parent=1 // pred_fallthru
      _
    %v89 = vld [vmem:[%s1] sm:$0xff]
    %v90 = vld [vmem:[%s1 + $0x8] sm:$0x1]
    %v91 = vld [vmem:[%s0] sm:$0x3]
    %v92 = vld [vmem:[%s0 + $0x2] sm:$0x3]
    %v93 = vld [vmem:[%s0 + $0x4] sm:$0x3]
    %v94 = vld [vmem:[%s0 + $0x6] sm:$0x3]
    %v95 = vld [vmem:[%s0 + $0x8] sm:$0x3]
    %v96 = vld [vmem:[%s0 + $0xa] sm:$0x3]
    %v97 = vld [vmem:[%s0 + $0xc] sm:$0x3]
    %v98 = vld [vmem:[%s0 + $0xe] sm:$0x3]
    %v99 = vcombine.low %v91, %v93
    %v101 = vunpack.c.l.s4 1983009808
    %v102 = vunpack.c.0.s8 %v101
    %v103 = vlaneseq
    %v104 = vshrl.u32 %v103, 7
    %v105 = vsub.s32 %v102, %v104
    %v106 = vrot.slane %v99, %v105
    %v107 = vcombine.low %v92, %v94
    %v109 = vunpack.c.l.s4 1983009808
    %v110 = vunpack.c.0.s8 %v109
    %v111 = vlaneseq
    %v112 = vshrl.u32 %v111, 7
    %v113 = vsub.s32 %v110, %v112
    %v114 = vrot.slane %v107, %v113
    %v115 = vcombine.low %v95, %v97
    %v117 = vunpack.c.l.s4 1983009808
    %v118 = vunpack.c.0.s8 %v117
    %v119 = vlaneseq
    %v120 = vshrl.u32 %v119, 7
    %v121 = vsub.s32 %v118, %v120
    %v122 = vrot.slane %v115, %v121
    %v123 = vcombine.low %v96, %v98
    %v125 = vunpack.c.l.s4 1983009808
    %v126 = vunpack.c.0.s8 %v125
    %v127 = vlaneseq
    %v128 = vshrl.u32 %v127, 7
    %v129 = vsub.s32 %v126, %v128
    %v130 = vrot.slane %v123, %v129
    %v131 = vcombine.low %v106, %v114
    %v133 = vunpack.c.l.s4 1934713408
    %v134 = vunpack.c.0.s8 %v133
    %v135 = vlaneseq
    %v136 = vshrl.u32 %v135, 7
    %v137 = vsub.s32 %v134, %v136
    %v138 = vrot.slane %v131, %v137
    %v139 = vcombine.low %v122, %v130
    %v141 = vunpack.c.l.s4 1934713408
    %v142 = vunpack.c.0.s8 %v141
    %v143 = vlaneseq
    %v144 = vshrl.u32 %v143, 7
    %v145 = vsub.s32 %v142, %v144
    %v146 = vrot.slane %v139, %v145
    %v147 = vcombine.low %v138, %v146
    %v148 = vcombine.high %v138, %v146
    %vm149 = vcmask 261120
    %v150 = vsel %vm149, %v147, 0.0
    %151 = vadd.xlane.f32.xlu0 %v150
    %v152 = vpop.xlane.xlu0 %151
    %v153 = vsel %vm149, %v148, 0.0
    %154 = vadd.xlane.f32.xlu0 %v153
    %v155 = vpop.xlane.xlu0 %154
    %v156 = vrcp.pop 32.0
    %v157 = vmul.f32 %v152, %v156
    %v158 = vmul.f32 %v155, %v156
    %v159 = vsub.f32 %v147, %v157
    %v160 = vsub.f32 %v148, %v158
    %v161 = vmul.f32 %v159, %v159
    %v162 = vmul.f32 %v160, %v160
    %v163 = vsel %vm149, %v161, 0.0
    %164 = vadd.xlane.f32.xlu0 %v163
    %v165 = vpop.xlane.xlu0 %164
    %v166 = vsel %vm149, %v162, 0.0
    %167 = vadd.xlane.f32.xlu0 %v166
    %v168 = vpop.xlane.xlu0 %167
    %v169 = vmul.f32 %v165, %v156
    %v170 = vmul.f32 %v168, %v156
    %v171 = vadd.f32 %v169, 1e-06
    %v172 = vadd.f32 %v170, 1e-06
    %v173 = vrsqrt.pop %v171
    %v174 = vrsqrt.pop %v172
    %v175 = vmul.f32 %v159, %v173
    %v176 = vmul.f32 %v160, %v174
    %v177 = vlaneseq
    %v178 = vshrl.u32 %v177, 7
    %v179 = vsub.s32 0, %v178
    %v180 = vrot.slane %v89, %v179
    %v181 = vmul.f32 %v175, %v180
    %v182 = vmul.f32 %v176, %v180
    %v183 = vlaneseq
    %v184 = vshrl.u32 %v183, 7
    %v185 = vsub.s32 1, %v184
    %v186 = vrot.slane %v89, %v185
    %v187 = vadd.f32 %v181, %v186
    %v188 = vadd.f32 %v182, %v186
    %v189 = vpack.c.bf16 %v188, %v187
    %v190 = vld [vmem:[%s2] sm:$0xf]
    %v191 = vld [vmem:[%s2 + $0x4] sm:$0xf]
    %v192 = vld [vmem:[%s2 + $0x8] sm:$0xf]
    %v193 = vld [vmem:[%s2 + $0xc] sm:$0xf]
    %v194 = vlaneseq
    %v195 = vshrl.u32 %v194, 7
    %v196 = vsub.s32 6, %v195
    %v197 = vrot.slane %v89, %v196
    %v202 = vunpack.c.l.b16 %v190
    %v203 = vunpack.c.l.b16 %v191
    %v204 = vunpack.c.l.b16 %v192
    %v205 = vunpack.c.l.b16 %v193
    %v206 = vpack.c.b16 %v203, %v202
    %v207 = vpack.c.b16 %v205, %v204
    %v211 = vsel %vm149, %v189, 0
    %213 = vmatprep.subr.bf16.mxu0 0
    %214 = vmatpush1.bf16.msra.mxu0 0
    %215 = vmatprep.subr.bf16.mxu0 0
    %216 = vmatpush1.bf16.msra.mxu0 0
    %217 = vmatprep.subr.bf16.mxu0 0
    %218 = vmatpush1.bf16.msra.mxu0 0
    %219 = vmatprep.subr.bf16.mxu0 0
    %220 = vmatpush1.bf16.msra.mxu0 0
    %221 = vmatprep.subr.bf16.mxu0 0
    %222 = vmatpush1.bf16.msra.mxu0 0
    %223 = vmatprep.subr.bf16.mxu0 0
    %224 = vmatpush1.bf16.msra.mxu0 0
    %225 = vmatprep.subr.bf16.mxu0 0
    %226 = vmatpush1.bf16.msra.mxu0 %v207
    %227 = vmatprep.subr.bf16.mxu0 0
    %228 = vmatpush1.bf16.msra.mxu0 %v206
    %229 = vmatprep.subr.bf16.mxu0 0
    %230 = vmatpush2.bf16.msra.mxu0 0
    %231 = vmatprep.subr.bf16.mxu0 0
    %232 = vmatpush2.bf16.msra.mxu0 0
    %233 = vmatprep.subr.bf16.mxu0 0
    %234 = vmatpush2.bf16.msra.mxu0 0
    %235 = vmatprep.subr.bf16.mxu0 0
    %236 = vmatpush2.bf16.msra.mxu0 0
    %237 = vmatprep.subr.bf16.mxu0 0
    %238 = vmatpush2.bf16.msra.mxu0 0
    %239 = vmatprep.subr.bf16.mxu0 0
    %240 = vmatpush2.bf16.msra.mxu0 0
    %241 = vmatprep.subr.bf16.mxu0 0
    %242 = vmatpush2.bf16.msra.mxu0 0
    %243 = vmatprep.subr.bf16.mxu0 0
    %244 = vmatpush2.bf16.msra.mxu0 0
    %245 = vmatprep.mubr.bf16.mxu0 0
    %246 = vmatmul.mubr.bf16.gmra.mxu0 %v211
    %v247 = vpop.f32.mrf.mxu0
    %v248 = vadd.f32 %v197, %v247
    %v249 = vpop.f32.mrf.mxu0
    %v250 = vpop.f32.mrf.mxu0
    %v251 = vadd.f32 %v197, %v250
    %v252 = vpop.f32.mrf.mxu0
    %253 = vdwg.mxu0
    %v254 = vld [vmem:[#allocation2] sm:$0xf]
    %v255 = vld [vmem:[#allocation2 + $0x4] sm:$0xf]
    %v256 = vld [vmem:[#allocation2 + $0x8] sm:$0xf]
    %v257 = vld [vmem:[#allocation2 + $0xc] sm:$0xf]
    %v258 = vlaneseq
    %v259 = vshrl.u32 %v258, 7
    %v260 = vsub.s32 7, %v259
    %v261 = vrot.slane %v89, %v260
    %v266 = vunpack.c.l.b16 %v254
    %v267 = vunpack.c.l.b16 %v255
    %v268 = vunpack.c.l.b16 %v256
    %v269 = vunpack.c.l.b16 %v257
    %v270 = vpack.c.b16 %v267, %v266
    %v271 = vpack.c.b16 %v269, %v268
    %274 = vmatprep.subr.bf16.mxu0 0
    %275 = vmatpush1.bf16.msra.mxu0 0
    %276 = vmatprep.subr.bf16.mxu0 0
    %277 = vmatpush1.bf16.msra.mxu0 0
    %278 = vmatprep.subr.bf16.mxu0 0
    %279 = vmatpush1.bf16.msra.mxu0 0
    %280 = vmatprep.subr.bf16.mxu0 0
    %281 = vmatpush1.bf16.msra.mxu0 0
    %282 = vmatprep.subr.bf16.mxu0 0
    %283 = vmatpush1.bf16.msra.mxu0 0
    %284 = vmatprep.subr.bf16.mxu0 0
    %285 = vmatpush1.bf16.msra.mxu0 0
    %286 = vmatprep.subr.bf16.mxu0 0
    %287 = vmatpush1.bf16.msra.mxu0 %v271
    %288 = vmatprep.subr.bf16.mxu0 0
    %289 = vmatpush1.bf16.msra.mxu0 %v270
    %290 = vmatprep.subr.bf16.mxu0 0
    %291 = vmatpush2.bf16.msra.mxu0 0
    %292 = vmatprep.subr.bf16.mxu0 0
    %293 = vmatpush2.bf16.msra.mxu0 0
    %294 = vmatprep.subr.bf16.mxu0 0
    %295 = vmatpush2.bf16.msra.mxu0 0
    %296 = vmatprep.subr.bf16.mxu0 0
    %297 = vmatpush2.bf16.msra.mxu0 0
    %298 = vmatprep.subr.bf16.mxu0 0
    %299 = vmatpush2.bf16.msra.mxu0 0
    %300 = vmatprep.subr.bf16.mxu0 0
    %301 = vmatpush2.bf16.msra.mxu0 0
    %302 = vmatprep.subr.bf16.mxu0 0
    %303 = vmatpush2.bf16.msra.mxu0 0
    %304 = vmatprep.subr.bf16.mxu0 0
    %305 = vmatpush2.bf16.msra.mxu0 0
    %306 = vmatprep.mubr.bf16.mxu0 0
    %307 = vmatmul.mubr.bf16.gmra.mxu0 %v211
    %v308 = vpop.f32.mrf.mxu0
    %v309 = vadd.f32 %v261, %v308
    %v310 = vpop.f32.mrf.mxu0
    %v311 = vpop.f32.mrf.mxu0
    %v312 = vadd.f32 %v261, %v311
    %v313 = vpop.f32.mrf.mxu0
    %314 = vdwg.mxu0
    %v315 = vld [vmem:[#allocation5] sm:$0xf]
    %v316 = vld [vmem:[#allocation5 + $0x4] sm:$0xf]
    %v317 = vld [vmem:[#allocation5 + $0x8] sm:$0xf]
    %v318 = vld [vmem:[#allocation5 + $0xc] sm:$0xf]
    %v319 = vlaneseq
    %v320 = vshrl.u32 %v319, 7
    %v321 = vsub.s32 0, %v320
    %v322 = vrot.slane %v90, %v321
    %v327 = vunpack.c.l.b16 %v315
    %v328 = vunpack.c.l.b16 %v316
    %v329 = vunpack.c.l.b16 %v317
    %v330 = vunpack.c.l.b16 %v318
    %v331 = vpack.c.b16 %v328, %v327
    %v332 = vpack.c.b16 %v330, %v329
    %335 = vmatprep.subr.bf16.mxu0 0
    %336 = vmatpush1.bf16.msra.mxu0 0
    %337 = vmatprep.subr.bf16.mxu0 0
    %338 = vmatpush1.bf16.msra.mxu0 0
    %339 = vmatprep.subr.bf16.mxu0 0
    %340 = vmatpush1.bf16.msra.mxu0 0
    %341 = vmatprep.subr.bf16.mxu0 0
    %342 = vmatpush1.bf16.msra.mxu0 0
    %343 = vmatprep.subr.bf16.mxu0 0
    %344 = vmatpush1.bf16.msra.mxu0 0
    %345 = vmatprep.subr.bf16.mxu0 0
    %346 = vmatpush1.bf16.msra.mxu0 0
    %347 = vmatprep.subr.bf16.mxu0 0
    %348 = vmatpush1.bf16.msra.mxu0 %v332
    %349 = vmatprep.subr.bf16.mxu0 0
    %350 = vmatpush1.bf16.msra.mxu0 %v331
    %351 = vmatprep.subr.bf16.mxu0 0
    %352 = vmatpush2.bf16.msra.mxu0 0
    %353 = vmatprep.subr.bf16.mxu0 0
    %354 = vmatpush2.bf16.msra.mxu0 0
    %355 = vmatprep.subr.bf16.mxu0 0
    %356 = vmatpush2.bf16.msra.mxu0 0
    %357 = vmatprep.subr.bf16.mxu0 0
    %358 = vmatpush2.bf16.msra.mxu0 0
    %359 = vmatprep.subr.bf16.mxu0 0
    %360 = vmatpush2.bf16.msra.mxu0 0
    %361 = vmatprep.subr.bf16.mxu0 0
    %362 = vmatpush2.bf16.msra.mxu0 0
    %363 = vmatprep.subr.bf16.mxu0 0
    %364 = vmatpush2.bf16.msra.mxu0 0
    %365 = vmatprep.subr.bf16.mxu0 0
    %366 = vmatpush2.bf16.msra.mxu0 0
    %367 = vmatprep.mubr.bf16.mxu0 0
    %368 = vmatmul.mubr.bf16.gmra.mxu0 %v211
    %v369 = vpop.f32.mrf.mxu0
    %v370 = vadd.f32 %v322, %v369
    %v371 = vpop.f32.mrf.mxu0
    %v372 = vpop.f32.mrf.mxu0
    %v373 = vadd.f32 %v322, %v372
    %v374 = vpop.f32.mrf.mxu0
    %375 = vdwg.mxu0
    %v376 = vmul.f32 %v248, 0.17677669
    %v377 = vmul.f32 %v251, 0.17677669
    %v378 = vpack.c.bf16 %v376, %v376
    %v379 = vpack.c.bf16 %v377, %v377
    %v380 = vpack.c.bf16 %v309, %v309
    %v381 = vpack.c.bf16 %v312, %v312
    %v382 = vpack.c.bf16 %v370, %v370
    %v383 = vpack.c.bf16 %v373, %v373
    %v385 = vsel %vm149, %v378, 0
    %v388 = vsel %vm149, %v380, 0
    %390 = vmatprep.subr.bf16.mxu0 0
    %391 = vmatpush1.bf16.xpose.msra.mxu0 0
    %392 = vmatprep.subr.bf16.mxu0 0
    %393 = vmatpush1.bf16.xpose.msra.mxu0 0
    %394 = vmatprep.subr.bf16.mxu0 0
    %395 = vmatpush1.bf16.xpose.msra.mxu0 0
    %396 = vmatprep.subr.bf16.mxu0 0
    %397 = vmatpush1.bf16.xpose.msra.mxu0 0
    %398 = vmatprep.subr.bf16.mxu0 0
    %399 = vmatpush1.bf16.xpose.msra.mxu0 0
    %400 = vmatprep.subr.bf16.mxu0 0
    %401 = vmatpush1.bf16.xpose.msra.mxu0 0
    %402 = vmatprep.subr.bf16.mxu0 0
    %403 = vmatpush1.bf16.xpose.msra.mxu0 0
    %404 = vmatprep.subr.bf16.mxu0 0
    %405 = vmatpush1.bf16.xpose.msra.mxu0 %v388
    %406 = vmatprep.subr.bf16.mxu0 0
    %407 = vmatpush2.bf16.xpose.msra.mxu0 0
    %408 = vmatprep.subr.bf16.mxu0 0
    %409 = vmatpush2.bf16.xpose.msra.mxu0 0
    %410 = vmatprep.subr.bf16.mxu0 0
    %411 = vmatpush2.bf16.xpose.msra.mxu0 0
    %412 = vmatprep.subr.bf16.mxu0 0
    %413 = vmatpush2.bf16.xpose.msra.mxu0 0
    %414 = vmatprep.subr.bf16.mxu0 0
    %415 = vmatpush2.bf16.xpose.msra.mxu0 0
    %416 = vmatprep.subr.bf16.mxu0 0
    %417 = vmatpush2.bf16.xpose.msra.mxu0 0
    %418 = vmatprep.subr.bf16.mxu0 0
    %419 = vmatpush2.bf16.xpose.msra.mxu0 0
    %420 = vmatprep.subr.bf16.mxu0 0
    %421 = vmatpush2.bf16.xpose.msra.mxu0 0
    %422 = vmatprep.mubr.bf16.mxu0 0
    %423 = vmatmul.mubr.bf16.gmra.mxu0 %v385
    %v424 = vpop.f32.mrf.mxu0
    %v425 = vadd.f32 0.0, %v424
    %v426 = vpop.f32.mrf.mxu0
    %v427 = vpop.f32.mrf.mxu0
    %v428 = vpop.f32.mrf.mxu0
    %429 = vdwg.mxu0
    %v431 = vsel %vm149, %v379, 0
    %v434 = vsel %vm149, %v381, 0
    %436 = vmatprep.subr.bf16.mxu0 0
    %437 = vmatpush1.bf16.xpose.msra.mxu0 0
    %438 = vmatprep.subr.bf16.mxu0 0
    %439 = vmatpush1.bf16.xpose.msra.mxu0 0
    %440 = vmatprep.subr.bf16.mxu0 0
    %441 = vmatpush1.bf16.xpose.msra.mxu0 0
    %442 = vmatprep.subr.bf16.mxu0 0
    %443 = vmatpush1.bf16.xpose.msra.mxu0 0
    %444 = vmatprep.subr.bf16.mxu0 0
    %445 = vmatpush1.bf16.xpose.msra.mxu0 0
    %446 = vmatprep.subr.bf16.mxu0 0
    %447 = vmatpush1.bf16.xpose.msra.mxu0 0
    %448 = vmatprep.subr.bf16.mxu0 0
    %449 = vmatpush1.bf16.xpose.msra.mxu0 0
    %450 = vmatprep.subr.bf16.mxu0 0
    %451 = vmatpush1.bf16.xpose.msra.mxu0 %v434
    %452 = vmatprep.subr.bf16.mxu0 0
    %453 = vmatpush2.bf16.xpose.msra.mxu0 0
    %454 = vmatprep.subr.bf16.mxu0 0
    %455 = vmatpush2.bf16.xpose.msra.mxu0 0
    %456 = vmatprep.subr.bf16.mxu0 0
    %457 = vmatpush2.bf16.xpose.msra.mxu0 0
    %458 = vmatprep.subr.bf16.mxu0 0
    %459 = vmatpush2.bf16.xpose.msra.mxu0 0
    %460 = vmatprep.subr.bf16.mxu0 0
    %461 = vmatpush2.bf16.xpose.msra.mxu0 0
    %462 = vmatprep.subr.bf16.mxu0 0
    %463 = vmatpush2.bf16.xpose.msra.mxu0 0
    %464 = vmatprep.subr.bf16.mxu0 0
    %465 = vmatpush2.bf16.xpose.msra.mxu0 0
    %466 = vmatprep.subr.bf16.mxu0 0
    %467 = vmatpush2.bf16.xpose.msra.mxu0 0
    %468 = vmatprep.mubr.bf16.mxu0 0
    %469 = vmatmul.mubr.bf16.gmra.mxu0 %v431
    %v470 = vpop.f32.mrf.mxu0
    %v471 = vadd.f32 0.0, %v470
    %v472 = vpop.f32.mrf.mxu0
    %v473 = vpop.f32.mrf.mxu0
    %v474 = vpop.f32.mrf.mxu0
    %475 = vdwg.mxu0
    %vm476 = vcmask 64512
    %v477 = vsel %vm476, %v425, -inf
    %478 = vmax.xlane.f32.xlu0 %v477
    %v479 = vpop.xlane.xlu0 %478
    %v480 = vsel %vm476, %v471, -inf
    %481 = vmax.xlane.f32.xlu0 %v480
    %v482 = vpop.xlane.xlu0 %481
    %v483 = vsub.f32 %v425, %v479
    %v484 = vsub.f32 %v471, %v482
    %v485 = vmul.f32 %v483, 1.442695
    %v486 = vpow.pop %v485
    %v487 = vmul.f32 %v484, 1.442695
    %v488 = vpow.pop %v487
    %v489 = vsel %vm476, %v486, 0.0
    %490 = vadd.xlane.f32.xlu0 %v489
    %v491 = vpop.xlane.xlu0 %490
    %v492 = vsel %vm476, %v488, 0.0
    %493 = vadd.xlane.f32.xlu0 %v492
    %v494 = vpop.xlane.xlu0 %493
    %v495 = vrcp.pop %v491
    %v496 = vrcp.pop %v494
    %v497 = vmul.f32 %v486, %v495
    %v498 = vmul.f32 %v488, %v496
    %v499 = vpack.c.bf16 %v497, %v497
    %v500 = vpack.c.bf16 %v498, %v498
    %v502 = vsel %vm476, %v499, 0
    %vm504 = vcmask 1043456
    %v506 = vsel %vm504, %v382, 0
    %508 = vmatprep.subr.bf16.mxu0 0
    %509 = vmatpush1.bf16.msra.mxu0 0
    %510 = vmatprep.subr.bf16.mxu0 0
    %511 = vmatpush1.bf16.msra.mxu0 0
    %512 = vmatprep.subr.bf16.mxu0 0
    %513 = vmatpush1.bf16.msra.mxu0 0
    %514 = vmatprep.subr.bf16.mxu0 0
    %515 = vmatpush1.bf16.msra.mxu0 0
    %516 = vmatprep.subr.bf16.mxu0 0
    %517 = vmatpush1.bf16.msra.mxu0 0
    %518 = vmatprep.subr.bf16.mxu0 0
    %519 = vmatpush1.bf16.msra.mxu0 0
    %520 = vmatprep.subr.bf16.mxu0 0
    %521 = vmatpush1.bf16.msra.mxu0 0
    %522 = vmatprep.subr.bf16.mxu0 0
    %523 = vmatpush1.bf16.msra.mxu0 %v506
    %524 = vmatprep.subr.bf16.mxu0 0
    %525 = vmatpush2.bf16.msra.mxu0 0
    %526 = vmatprep.subr.bf16.mxu0 0
    %527 = vmatpush2.bf16.msra.mxu0 0
    %528 = vmatprep.subr.bf16.mxu0 0
    %529 = vmatpush2.bf16.msra.mxu0 0
    %530 = vmatprep.subr.bf16.mxu0 0
    %531 = vmatpush2.bf16.msra.mxu0 0
    %532 = vmatprep.subr.bf16.mxu0 0
    %533 = vmatpush2.bf16.msra.mxu0 0
    %534 = vmatprep.subr.bf16.mxu0 0
    %535 = vmatpush2.bf16.msra.mxu0 0
    %536 = vmatprep.subr.bf16.mxu0 0
    %537 = vmatpush2.bf16.msra.mxu0 0
    %538 = vmatprep.subr.bf16.mxu0 0
    %539 = vmatpush2.bf16.msra.mxu0 0
    %540 = vmatprep.mubr.bf16.mxu0 0
    %541 = vmatmul.mubr.bf16.gmra.mxu0 %v502
    %v542 = vpop.f32.mrf.mxu0
    %v543 = vadd.f32 0.0, %v542
    %v544 = vpop.f32.mrf.mxu0
    %v545 = vpop.f32.mrf.mxu0
    %v546 = vpop.f32.mrf.mxu0
    %547 = vdwg.mxu0
    %v549 = vsel %vm476, %v500, 0
    %v552 = vsel %vm504, %v383, 0
    %554 = vmatprep.subr.bf16.mxu0 0
    %555 = vmatpush1.bf16.msra.mxu0 0
    %556 = vmatprep.subr.bf16.mxu0 0
    %557 = vmatpush1.bf16.msra.mxu0 0
    %558 = vmatprep.subr.bf16.mxu0 0
    %559 = vmatpush1.bf16.msra.mxu0 0
    %560 = vmatprep.subr.bf16.mxu0 0
    %561 = vmatpush1.bf16.msra.mxu0 0
    %562 = vmatprep.subr.bf16.mxu0 0
    %563 = vmatpush1.bf16.msra.mxu0 0
    %564 = vmatprep.subr.bf16.mxu0 0
    %565 = vmatpush1.bf16.msra.mxu0 0
    %566 = vmatprep.subr.bf16.mxu0 0
    %567 = vmatpush1.bf16.msra.mxu0 0
    %568 = vmatprep.subr.bf16.mxu0 0
    %569 = vmatpush1.bf16.msra.mxu0 %v552
    %570 = vmatprep.subr.bf16.mxu0 0
    %571 = vmatpush2.bf16.msra.mxu0 0
    %572 = vmatprep.subr.bf16.mxu0 0
    %573 = vmatpush2.bf16.msra.mxu0 0
    %574 = vmatprep.subr.bf16.mxu0 0
    %575 = vmatpush2.bf16.msra.mxu0 0
    %576 = vmatprep.subr.bf16.mxu0 0
    %577 = vmatpush2.bf16.msra.mxu0 0
    %578 = vmatprep.subr.bf16.mxu0 0
    %579 = vmatpush2.bf16.msra.mxu0 0
    %580 = vmatprep.subr.bf16.mxu0 0
    %581 = vmatpush2.bf16.msra.mxu0 0
    %582 = vmatprep.subr.bf16.mxu0 0
    %583 = vmatpush2.bf16.msra.mxu0 0
    %584 = vmatprep.subr.bf16.mxu0 0
    %585 = vmatpush2.bf16.msra.mxu0 0
    %586 = vmatprep.mubr.bf16.mxu0 0
    %587 = vmatmul.mubr.bf16.gmra.mxu0 %v549
    %v588 = vpop.f32.mrf.mxu0
    %v589 = vadd.f32 0.0, %v588
    %v590 = vpop.f32.mrf.mxu0
    %v591 = vpop.f32.mrf.mxu0
    %v592 = vpop.f32.mrf.mxu0
    %593 = vdwg.mxu0
    %v594 = vpack.c.bf16 %v589, %v543
    %v595 = vld [vmem:[#allocation7] sm:$0xf]
    %v596 = vld [vmem:[#allocation7 + $0x4] sm:$0xf]
    %v597 = vld [vmem:[#allocation7 + $0x8] sm:$0xf]
    %v598 = vld [vmem:[#allocation7 + $0xc] sm:$0xf]
    %v599 = vlaneseq
    %v600 = vshrl.u32 %v599, 7
    %v601 = vsub.s32 4, %v600
    %v602 = vrot.slane %v89, %v601
    %v607 = vunpack.c.l.b16 %v595
    %v608 = vunpack.c.l.b16 %v596
    %v609 = vunpack.c.l.b16 %v597
    %v610 = vunpack.c.l.b16 %v598
    %v611 = vpack.c.b16 %v608, %v607
    %v612 = vpack.c.b16 %v610, %v609
    %v616 = vsel %vm149, %v594, 0
    %618 = vmatprep.subr.bf16.mxu0 0
    %619 = vmatpush1.bf16.msra.mxu0 0
    %620 = vmatprep.subr.bf16.mxu0 0
    %621 = vmatpush1.bf16.msra.mxu0 0
    %622 = vmatprep.subr.bf16.mxu0 0
    %623 = vmatpush1.bf16.msra.mxu0 0
    %624 = vmatprep.subr.bf16.mxu0 0
    %625 = vmatpush1.bf16.msra.mxu0 0
    %626 = vmatprep.subr.bf16.mxu0 0
    %627 = vmatpush1.bf16.msra.mxu0 0
    %628 = vmatprep.subr.bf16.mxu0 0
    %629 = vmatpush1.bf16.msra.mxu0 0
    %630 = vmatprep.subr.bf16.mxu0 0
    %631 = vmatpush1.bf16.msra.mxu0 %v612
    %632 = vmatprep.subr.bf16.mxu0 0
    %633 = vmatpush1.bf16.msra.mxu0 %v611
    %634 = vmatprep.subr.bf16.mxu0 0
    %635 = vmatpush2.bf16.msra.mxu0 0
    %636 = vmatprep.subr.bf16.mxu0 0
    %637 = vmatpush2.bf16.msra.mxu0 0
    %638 = vmatprep.subr.bf16.mxu0 0
    %639 = vmatpush2.bf16.msra.mxu0 0
    %640 = vmatprep.subr.bf16.mxu0 0
    %641 = vmatpush2.bf16.msra.mxu0 0
    %642 = vmatprep.subr.bf16.mxu0 0
    %643 = vmatpush2.bf16.msra.mxu0 0
    %644 = vmatprep.subr.bf16.mxu0 0
    %645 = vmatpush2.bf16.msra.mxu0 0
    %646 = vmatprep.subr.bf16.mxu0 0
    %647 = vmatpush2.bf16.msra.mxu0 0
    %648 = vmatprep.subr.bf16.mxu0 0
    %649 = vmatpush2.bf16.msra.mxu0 0
    %650 = vmatprep.mubr.bf16.mxu0 0
    %651 = vmatmul.mubr.bf16.gmra.mxu0 %v616
    %v652 = vpop.f32.mrf.mxu0
    %v653 = vadd.f32 %v602, %v652
    %v654 = vpop.f32.mrf.mxu0
    %v655 = vpop.f32.mrf.mxu0
    %v656 = vadd.f32 %v602, %v655
    %v657 = vpop.f32.mrf.mxu0
    %658 = vdwg.mxu0
    %v659 = vadd.f32 %v653, %v147
    %v660 = vadd.f32 %v656, %v148
    %v661 = vsel %vm149, %v659, 0.0
    %662 = vadd.xlane.f32.xlu0 %v661
    %v663 = vpop.xlane.xlu0 %662
    %v664 = vsel %vm149, %v660, 0.0
    %665 = vadd.xlane.f32.xlu0 %v664
    %v666 = vpop.xlane.xlu0 %665
    %v667 = vmul.f32 %v663, %v156
    %v668 = vmul.f32 %v666, %v156
    %v669 = vsub.f32 %v659, %v667
    %v670 = vsub.f32 %v660, %v668
    %v671 = vmul.f32 %v669, %v669
    %v672 = vmul.f32 %v670, %v670
    %v673 = vsel %vm149, %v671, 0.0
    %674 = vadd.xlane.f32.xlu0 %v673
    %v675 = vpop.xlane.xlu0 %674
    %v676 = vsel %vm149, %v672, 0.0
    %677 = vadd.xlane.f32.xlu0 %v676
    %v678 = vpop.xlane.xlu0 %677
    %v679 = vmul.f32 %v675, %v156
    %v680 = vmul.f32 %v678, %v156
    %v681 = vadd.f32 %v679, 1e-06
    %v682 = vadd.f32 %v680, 1e-06
    %v683 = vrsqrt.pop %v681
    %v684 = vrsqrt.pop %v682
    %v685 = vmul.f32 %v669, %v683
    %v686 = vmul.f32 %v670, %v684
    %v687 = vlaneseq
    %v688 = vshrl.u32 %v687, 7
    %v689 = vsub.s32 2, %v688
    %v690 = vrot.slane %v89, %v689
    %v691 = vmul.f32 %v685, %v690
    %v692 = vmul.f32 %v686, %v690
    %v693 = vlaneseq
    %v694 = vshrl.u32 %v693, 7
    %v695 = vsub.s32 3, %v694
    %v696 = vrot.slane %v89, %v695
    %v697 = vadd.f32 %v691, %v696
    %v698 = vadd.f32 %v692, %v696
    %v699 = vpack.c.bf16 %v698, %v697
    %v700 = vld [vmem:[#allocation8] sm:$0xf]
    %v701 = vld [vmem:[#allocation8 + $0x4] sm:$0xf]
    %v702 = vld [vmem:[#allocation8 + $0x8] sm:$0xf]
    %v703 = vld [vmem:[#allocation8 + $0xc] sm:$0xf]
    %v704 = vld [vmem:[%s7] sm:$0x1]
    %v706 = vlaneseq
    %v707 = vshrl.u32 %v706, 7
    %v708 = vsub.s32 0, %v707
    %v709 = vrot.slane %v704, %v708
    %v715 = vunpack.c.l.b16 %v700
    %v716 = vunpack.c.l.b16 %v701
    %v717 = vunpack.c.l.b16 %v702
    %v718 = vunpack.c.l.b16 %v703
    %v719 = vpack.c.b16 %v716, %v715
    %v720 = vpack.c.b16 %v718, %v717
    %v724 = vsel %vm149, %v699, 0
    %726 = vmatprep.subr.bf16.mxu0 0
    %727 = vmatpush1.bf16.msra.mxu0 0
    %728 = vmatprep.subr.bf16.mxu0 0
    %729 = vmatpush1.bf16.msra.mxu0 0
    %730 = vmatprep.subr.bf16.mxu0 0
    %731 = vmatpush1.bf16.msra.mxu0 0
    %732 = vmatprep.subr.bf16.mxu0 0
    %733 = vmatpush1.bf16.msra.mxu0 0
    %734 = vmatprep.subr.bf16.mxu0 0
    %735 = vmatpush1.bf16.msra.mxu0 0
    %736 = vmatprep.subr.bf16.mxu0 0
    %737 = vmatpush1.bf16.msra.mxu0 0
    %738 = vmatprep.subr.bf16.mxu0 0
    %739 = vmatpush1.bf16.msra.mxu0 %v720
    %740 = vmatprep.subr.bf16.mxu0 0
    %741 = vmatpush1.bf16.msra.mxu0 %v719
    %742 = vmatprep.subr.bf16.mxu0 0
    %743 = vmatpush2.bf16.msra.mxu0 0
    %744 = vmatprep.subr.bf16.mxu0 0
    %745 = vmatpush2.bf16.msra.mxu0 0
    %746 = vmatprep.subr.bf16.mxu0 0
    %747 = vmatpush2.bf16.msra.mxu0 0
    %748 = vmatprep.subr.bf16.mxu0 0
    %749 = vmatpush2.bf16.msra.mxu0 0
    %750 = vmatprep.subr.bf16.mxu0 0
    %751 = vmatpush2.bf16.msra.mxu0 0
    %752 = vmatprep.subr.bf16.mxu0 0
    %753 = vmatpush2.bf16.msra.mxu0 0
    %754 = vmatprep.subr.bf16.mxu0 0
    %755 = vmatpush2.bf16.msra.mxu0 0
    %756 = vmatprep.subr.bf16.mxu0 0
    %757 = vmatpush2.bf16.msra.mxu0 0
    %758 = vmatprep.mubr.bf16.mxu0 0
    %759 = vmatmul.mubr.bf16.gmra.mxu0 %v724
    %v760 = vpop.f32.mrf.mxu0
    %v761 = vadd.f32 %v709, %v760
    %v762 = vpop.f32.mrf.mxu0
    %v763 = vpop.f32.mrf.mxu0
    %v764 = vadd.f32 %v709, %v763
    %v765 = vpop.f32.mrf.mxu0
    %766 = vdwg.mxu0
    %v767 = vmul.f32 %v761, 0.5
    %v768 = vmul.f32 %v764, 0.5
    %v769 = vmul.f32 %v761, 0.70710677
    %v770 = vmul.f32 %v764, 0.70710677
    %v771 = verf.f32.pop %v769
    %v772 = verf.f32.pop %v770
    %v773 = vadd.f32 %v771, 1.0
    %v774 = vadd.f32 %v772, 1.0
    %v775 = vmul.f32 %v767, %v773
    %v776 = vmul.f32 %v768, %v774
    %v777 = vpack.c.bf16 %v776, %v775
    %v778 = vld [vmem:[%s8] sm:$0xf]
    %v779 = vld [vmem:[%s8 + $0x4] sm:$0xf]
    %v780 = vld [vmem:[%s8 + $0x8] sm:$0xf]
    %v781 = vld [vmem:[%s8 + $0xc] sm:$0xf]
    %v782 = vld [vmem:[%s8 + $0x10] sm:$0xf]
    %v783 = vld [vmem:[%s8 + $0x14] sm:$0xf]
    %v784 = vld [vmem:[%s8 + $0x18] sm:$0xf]
    %v785 = vld [vmem:[%s8 + $0x1c] sm:$0xf]
    %v786 = vlaneseq
    %v787 = vshrl.u32 %v786, 7
    %v788 = vsub.s32 5, %v787
    %v789 = vrot.slane %v89, %v788
    %v798 = vunpack.c.l.b16 %v778
    %v799 = vunpack.c.l.b16 %v779
    %v800 = vunpack.c.l.b16 %v780
    %v801 = vunpack.c.l.b16 %v781
    %v802 = vunpack.c.l.b16 %v782
    %v803 = vunpack.c.l.b16 %v783
    %v804 = vunpack.c.l.b16 %v784
    %v805 = vunpack.c.l.b16 %v785
    %v806 = vpack.c.b16 %v799, %v798
    %v807 = vpack.c.b16 %v801, %v800
    %v808 = vpack.c.b16 %v803, %v802
    %v809 = vpack.c.b16 %v805, %v804
    %vm814 = vcmask 523264
    %v816 = vsel %vm814, %v777, 0
    %818 = vmatprep.subr.bf16.mxu0 0
    %819 = vmatpush1.bf16.msra.mxu0 0
    %820 = vmatprep.subr.bf16.mxu0 0
    %821 = vmatpush1.bf16.msra.mxu0 0
    %822 = vmatprep.subr.bf16.mxu0 0
    %823 = vmatpush1.bf16.msra.mxu0 0
    %824 = vmatprep.subr.bf16.mxu0 0
    %825 = vmatpush1.bf16.msra.mxu0 0
    %826 = vmatprep.subr.bf16.mxu0 0
    %827 = vmatpush1.bf16.msra.mxu0 %v809
    %828 = vmatprep.subr.bf16.mxu0 0
    %829 = vmatpush1.bf16.msra.mxu0 %v808
    %830 = vmatprep.subr.bf16.mxu0 0
    %831 = vmatpush1.bf16.msra.mxu0 %v807
    %832 = vmatprep.subr.bf16.mxu0 0
    %833 = vmatpush1.bf16.msra.mxu0 %v806
    %834 = vmatprep.subr.bf16.mxu0 0
    %835 = vmatpush2.bf16.msra.mxu0 0
    %836 = vmatprep.subr.bf16.mxu0 0
    %837 = vmatpush2.bf16.msra.mxu0 0
    %838 = vmatprep.subr.bf16.mxu0 0
    %839 = vmatpush2.bf16.msra.mxu0 0
    %840 = vmatprep.subr.bf16.mxu0 0
    %841 = vmatpush2.bf16.msra.mxu0 0
    %842 = vmatprep.subr.bf16.mxu0 0
    %843 = vmatpush2.bf16.msra.mxu0 0
    %844 = vmatprep.subr.bf16.mxu0 0
    %845 = vmatpush2.bf16.msra.mxu0 0
    %846 = vmatprep.subr.bf16.mxu0 0
    %847 = vmatpush2.bf16.msra.mxu0 0
    %848 = vmatprep.subr.bf16.mxu0 0
    %849 = vmatpush2.bf16.msra.mxu0 0
    %850 = vmatprep.mubr.bf16.mxu0 0
    %851 = vmatmul.mubr.bf16.gmra.mxu0 %v816
    %v852 = vpop.f32.mrf.mxu0
    %v853 = vadd.f32 %v789, %v852
    %v854 = vpop.f32.mrf.mxu0
    %v855 = vpop.f32.mrf.mxu0
    %v856 = vadd.f32 %v789, %v855
    %v857 = vpop.f32.mrf.mxu0
    %858 = vdwg.mxu0
    %v859 = vmul.f32 %v853, 0.5
    %v860 = vmul.f32 %v856, 0.5
    %v861 = vmul.f32 %v853, 0.70710677
    %v862 = vmul.f32 %v856, 0.70710677
    %v863 = verf.f32.pop %v861
    %v864 = verf.f32.pop %v862
    %v865 = vadd.f32 %v863, 1.0
    %v866 = vadd.f32 %v864, 1.0
    %v867 = vmul.f32 %v859, %v865
    %v868 = vmul.f32 %v860, %v866
    %v869 = vadd.f32 %v659, %v867
    %v870 = vadd.f32 %v660, %v868
    %v871 = vcombine.high %v869, 0.0
    %v873 = vunpack.c.l.s4 1983009808
    %v874 = vunpack.c.0.s8 %v873
    %v875 = vlaneseq
    %v876 = vshrl.u32 %v875, 7
    %v877 = vsub.s32 %v874, %v876
    %v878 = vrot.slane %v869, %v877
    %v880 = vunpack.c.l.s4 1983009808
    %v881 = vunpack.c.0.s8 %v880
    %v882 = vlaneseq
    %v883 = vshrl.u32 %v882, 7
    %v884 = vsub.s32 %v881, %v883
    %v885 = vrot.slane %v871, %v884
    %v886 = vcombine.high %v870, 0.0
    %v888 = vunpack.c.l.s4 1983009808
    %v889 = vunpack.c.0.s8 %v888
    %v890 = vlaneseq
    %v891 = vshrl.u32 %v890, 7
    %v892 = vsub.s32 %v889, %v891
    %v893 = vrot.slane %v870, %v892
    %v895 = vunpack.c.l.s4 1983009808
    %v896 = vunpack.c.0.s8 %v895
    %v897 = vlaneseq
    %v898 = vshrl.u32 %v897, 7
    %v899 = vsub.s32 %v896, %v898
    %v900 = vrot.slane %v886, %v899
    %v901 = vcombine.low %v878, %v893
    %v902 = vcombine.high %v878, %v893
    %v904 = vunpack.c.l.s4 1934713408
    %v905 = vunpack.c.0.s8 %v904
    %v906 = vlaneseq
    %v907 = vshrl.u32 %v906, 7
    %v908 = vsub.s32 %v905, %v907
    %v909 = vrot.slane %v901, %v908
    %v911 = vunpack.c.l.s4 1934713408
    %v912 = vunpack.c.0.s8 %v911
    %v913 = vlaneseq
    %v914 = vshrl.u32 %v913, 7
    %v915 = vsub.s32 %v912, %v914
    %v916 = vrot.slane %v902, %v915
    %v917 = vcombine.low %v885, %v900
    %v918 = vcombine.high %v885, %v900
    %v920 = vunpack.c.l.s4 1934713408
    %v921 = vunpack.c.0.s8 %v920
    %v922 = vlaneseq
    %v923 = vshrl.u32 %v922, 7
    %v924 = vsub.s32 %v921, %v923
    %v925 = vrot.slane %v917, %v924
    %v927 = vunpack.c.l.s4 1934713408
    %v928 = vunpack.c.0.s8 %v927
    %v929 = vlaneseq
    %v930 = vshrl.u32 %v929, 7
    %v931 = vsub.s32 %v928, %v930
    %v932 = vrot.slane %v918, %v931
    %v933 = vcombine.high %v909, 0.0
    %v934 = vcombine.high %v916, 0.0
    %v935 = vcombine.high %v925, 0.0
    %v936 = vcombine.high %v932, 0.0
    %vm937 = vcmask 254976
    %938 = vst.msk [vmem:[#allocation10] sm:$0x3] %vm937, %v909
    %939 = vst.msk [vmem:[#allocation10 + $0x2] sm:$0x3] %vm937, %v933
    %940 = vst.msk [vmem:[#allocation10 + $0x4] sm:$0x3] %vm937, %v916
    %941 = vst.msk [vmem:[#allocation10 + $0x6] sm:$0x3] %vm937, %v934
    %942 = vst.msk [vmem:[#allocation10 + $0x8] sm:$0x3] %vm937, %v925
    %943 = vst.msk [vmem:[#allocation10 + $0xa] sm:$0x3] %vm937, %v935
    %944 = vst.msk [vmem:[#allocation10 + $0xc] sm:$0x3] %vm937, %v932
    %945 = vst.msk [vmem:[#allocation10 + $0xe] sm:$0x3] %vm937, %v936
    // Predicated region
    $region54: #{tpu_custom_call.1} parent=1 // pred_check
      _
    $region55: #{tpu_custom_call.1} parent=1 // pred_check_branch
      %947 = sbr.rel (0) target = $region57
    $region56: #{tpu_custom_call.1} parent=1 // pred_region
      %s949 = ssub.s32 256, 256
      %950 = vsyncadd [#allocation4], %s949
      %s951 = sshll.u32 [#allocation10], 4
      %s952 = int_to_ptr.vmem [resolvable:$true] %s951
      %957 = dma.vmem_to_hbm [thread:$0]  %s952, 256, %s9, [#allocation4], 32, 32, 2
    $region57: #{tpu_custom_call.1} parent=1 // pred_fallthru
      _
    // Predicated region
    $region58: #{tpu_custom_call.1} parent=1 // pred_check
      _
    $region59: #{tpu_custom_call.1} parent=1 // pred_check_branch
      %959 = sbr.rel (0) target = $region61
    $region60: #{tpu_custom_call.1} parent=1 // pred_region
      %960 = dma.done [#allocation4], 256
    $region61: #{tpu_custom_call.1} parent=1 // pred_fallthru
      _
    %961 = vsyncpa [#allocation3], 1
    %962 = vsyncpa [#allocation6], 1
    %963 = vsyncpa [#allocation9], 1
    %964 = vsyncpa [#allocation4], 1

</llo_original>
